<compile_context>
chip_gen: v5e
topology: v5e:2x2
jax: 0.10.0
libtpu: 0.0.40
codegen_flags: <defaults>
</compile_context>

<pallas_src>
import functools

import jax
import jax.numpy as jnp
from jax import lax
from jax.experimental import pallas as pl
from jax.experimental.pallas import tpu as pltpu


# --------------------------------------------------------------------------
# Fused Pallas kernel: (pool) + conv(as one matmul) + BN + ReLU, per batch image
# --------------------------------------------------------------------------
def _down_conv_bn_relu_kernel(x_ref, w_ref, scale_ref, bias_ref, o_ref, *,
                              pool, cin, ksize, dilation, pad):
    """x_ref : pool=True  -> (1, Hq, 2, Wq, 2*Cin)  window-folded, channel-last, bf16
               pool=False -> (1, H, W, Cin)          NHWC, bf16
       w_ref : (Cout, k*k*Cin) bf16   (tap-major, then channel)
       scale_ref, bias_ref : (Cout, 1) f32  (folded BatchNorm)
       o_ref : (1, Cout, Hout*Wout) f32   (lane dim = Hout*Wout -> lane-dense stores)."""
    if pool:
        xw = x_ref[0]                                   # (Hq, 2, Wq, 2*Cin)
        a = jnp.maximum(xw[:, 0], xw[:, 1])             # max over window rows
        t = jnp.maximum(a[:, :, :cin], a[:, :, cin:])   # max over window cols -> (Hq, Wq, Cin)
    else:
        t = x_ref[0]                                    # (H, W, Cin)

    hq, wq = t.shape[0], t.shape[1]

    # SAME zero padding, built in VMEM (never round-trips HBM).
    if pad > 0:
        zr = jnp.zeros((pad, wq, cin), t.dtype)
        tp = jnp.concatenate([zr, t, zr], axis=0)                    # (hq+2p, wq, C)
        zc = jnp.zeros((hq + 2 * pad, pad, cin), t.dtype)
        tp = jnp.concatenate([zc, tp, zc], axis=1)                   # (hq+2p, wq+2p, C)
    else:
        tp = t

    hout = hq + 2 * pad - dilation * (ksize - 1)
    wout = wq + 2 * pad - dilation * (ksize - 1)

    # im2col in VMEM: k*k statically shifted views -> one (Hout*Wout, k*k*Cin) slab.
    slabs = [
        tp[ky * dilation:ky * dilation + hout,
           kx * dilation:kx * dilation + wout, :].reshape(hout * wout, cin)
        for ky in range(ksize) for kx in range(ksize)
    ]
    patch = jnp.concatenate(slabs, axis=1)              # (Hout*Wout, k*k*Cin) bf16

    # One MXU matmul (A @ B^T) so the result is (Cout, Hout*Wout): HW on lanes.
    y = lax.dot_general(w_ref[...], patch,
                        (((1,), (1,)), ((), ())),
                        preferred_element_type=jnp.float32)          # (Cout, HW) f32

    y = y * scale_ref[...] + bias_ref[...]              # folded BatchNorm (f32 epilogue)
    o_ref[0] = jnp.maximum(y, 0.0)                      # ReLU


# --------------------------------------------------------------------------
# Wrapper (PyTorch NCHW in / NCHW out)
# --------------------------------------------------------------------------
def down_conv_bn_relu(x_nchw, weight, gamma, beta, running_mean, running_var,
                      *, kernel_size=3, dilation=1, down_flag=True, eps=1e-5):
    """Forward of DownConvBNReLU.
       x_nchw : (B, Cin, H, W) f32, weight: (Cout, Cin, k, k) f32 (PyTorch layout).
       Returns (B, Cout, Hout, Wout) f32."""
    B, Cin, H, W = x_nchw.shape
    Cout = weight.shape[0]
    k, d = kernel_size, dilation
    pad = k // 2 if d == 1 else d

    x = x_nchw.astype(jnp.float32)
    if down_flag:
        # ceil_mode=True max-pool: pad odd spatial dims with -inf so the last
        # (partial) window reduces only over valid elements.
        ph, pw = H % 2, W % 2
        if ph or pw:
            x = jnp.pad(x, ((0, 0), (0, 0), (0, ph), (0, pw)),
                        constant_values=-jnp.inf)
        Hq, Wq = (H + ph) // 2, (W + pw) // 2
        # Window-folded channel-last layout (B, Hq, 2, Wq, 2*Cin): a single XLA
        # transpose of the raw input -- no 9x im2col and no 6-D window transpose.
        xf = x.reshape(B, Cin, Hq, 2, Wq, 2)
        xf = jnp.transpose(xf, (0, 2, 3, 4, 5, 1)).reshape(B, Hq, 2, Wq, 2 * Cin)
        xk = xf.astype(jnp.bfloat16)
        in_block = (1, Hq, 2, Wq, 2 * Cin)
        x_index_map = lambda b: (b, 0, 0, 0, 0)
        Hc, Wc = Hq, Wq
    else:
        xk = jnp.transpose(x, (0, 2, 3, 1)).astype(jnp.bfloat16)     # NHWC
        in_block = (1, H, W, Cin)
        x_index_map = lambda b: (b, 0, 0, 0)
        Hc, Wc = H, W

    Hout = Hc + 2 * pad - d * (k - 1)
    Wout = Wc + 2 * pad - d * (k - 1)

    # Weight (Cout, Cin, k, k) -> (Cout, k*k*Cin): tap-major then channel, matching
    # the in-kernel patch lane order. bf16 for the MXU.
    w9 = jnp.transpose(weight, (0, 2, 3, 1)).reshape(Cout, k * k * Cin)
    w9 = w9.astype(jnp.bfloat16)

    # Inference BatchNorm folded into per-channel scale/bias (kept in f32).
    scale = (gamma / jnp.sqrt(running_var + eps)).astype(jnp.float32)
    bias = (beta - running_mean * scale).astype(jnp.float32)
    scale2 = scale.reshape(Cout, 1)
    bias2 = bias.reshape(Cout, 1)

    kern = functools.partial(_down_conv_bn_relu_kernel, pool=down_flag,
                             cin=Cin, ksize=k, dilation=d, pad=pad)

    out = pl.pallas_call(
        kern,
        out_shape=jax.ShapeDtypeStruct((B, Cout, Hout * Wout), jnp.float32),
        grid=(B,),
        in_specs=[
            pl.BlockSpec(in_block, x_index_map),
            pl.BlockSpec((Cout, k * k * Cin), lambda b: (0, 0)),
            pl.BlockSpec((Cout, 1), lambda b: (0, 0)),
            pl.BlockSpec((Cout, 1), lambda b: (0, 0)),
        ],
        out_specs=pl.BlockSpec((1, Cout, Hout * Wout), lambda b: (b, 0, 0)),
        compiler_params=pltpu.CompilerParams(
            dimension_semantics=("parallel",)),       # v7x: split batch across 2 TCs
    )(xk, w9, scale2, bias2)

    return out.reshape(B, Cout, Hout, Wout)            # free reshape -> NCHW


# --------------------------------------------------------------------------
# Pure-JAX reference (for correctness check)
# --------------------------------------------------------------------------
def _reference(x, weight, gamma, beta, mean, var, *, kernel_size, dilation,
               down_flag, eps=1e-5):
    k, d = kernel_size, dilation
    pad = k // 2 if d == 1 else d
    if down_flag:
        B, C, H, W = x.shape
        ph, pw = H % 2, W % 2
        if ph or pw:
            x = jnp.pad(x, ((0, 0), (0, 0), (0, ph), (0, pw)),
                        constant_values=-jnp.inf)
        x = x.reshape(B, C, (H + ph) // 2, 2, (W + pw) // 2, 2).max(axis=(3, 5))
    y = lax.conv_general_dilated(
        x, weight, window_strides=(1, 1),
        padding=[(pad, pad), (pad, pad)], rhs_dilation=(d, d),
        dimension_numbers=("NCHW", "OIHW", "NCHW"))
    scale = gamma / jnp.sqrt(var + eps)
    bias = beta - mean * scale
    y = y * scale[None, :, None, None] + bias[None, :, None, None]
    return jnp.maximum(y, 0.0)


# --------------------------------------------------------------------------
if __name__ == "__main__":
    B, Cin, H, W = 2, 4, 16, 16
    Cout = 8

    key = jax.random.PRNGKey(0)
    k1, k2, k3, k4, k5, k6 = jax.random.split(key, 6)
    x = jax.random.normal(k1, (B, Cin, H, W), jnp.float32)
    weight = 0.1 * jax.random.normal(k2, (Cout, Cin, 3, 3), jnp.float32)
    gamma = 1.0 + 0.1 * jax.random.normal(k3, (Cout,), jnp.float32)
    beta = 0.1 * jax.random.normal(k4, (Cout,), jnp.float32)
    mean = 0.1 * jax.random.normal(k5, (Cout,), jnp.float32)
    var = 1.0 + 0.1 * jax.random.uniform(k6, (Cout,), jnp.float32)

    # DownConvBNReLU default path: flag=True -> 2x2 ceil-mode pool, then conv+BN+ReLU.
    out = down_conv_bn_relu(x, weight, gamma, beta, mean, var,
                            kernel_size=3, dilation=1, down_flag=True)
    out = jax.block_until_ready(out)
    assert out.shape == (B, Cout, H // 2, W // 2), out.shape
    assert bool(jnp.all(jnp.isfinite(out)))
    ref = _reference(x, weight, gamma, beta, mean, var,
                     kernel_size=3, dilation=1, down_flag=True)
    err = float(jnp.max(jnp.abs(out - ref)))
    assert err < 5e-2, err                              # bf16 matmul inputs, f32 accumulate

    # flag=False path (plain ConvBNReLU behaviour), dilated variant.
    out2 = down_conv_bn_relu(x, weight, gamma, beta, mean, var,
                             kernel_size=3, dilation=2, down_flag=False)
    out2 = jax.block_until_ready(out2)
    assert out2.shape == (B, Cout, H, W), out2.shape
    assert bool(jnp.all(jnp.isfinite(out2)))
    ref2 = _reference(x, weight, gamma, beta, mean, var,
                      kernel_size=3, dilation=2, down_flag=False)
    err2 = float(jnp.max(jnp.abs(out2 - ref2)))
    assert err2 < 5e-2, err2

    print("KERNEL_OK")
</pallas_src>

<mosaic_0001>
module attributes {stable_mosaic.version = 11 : i64} {
  func.func @_down_conv_bn_relu_kernel(%arg0: i32, %arg1: memref<1x8x2x8x8xbf16, #tpu.memory_space<vmem>>, %arg2: memref<8x36xbf16, #tpu.memory_space<vmem>>, %arg3: memref<8x1xf32, #tpu.memory_space<vmem>>, %arg4: memref<8x1xf32, #tpu.memory_space<vmem>>, %arg5: memref<1x8x64xf32, #tpu.memory_space<vmem>>) attributes {dimension_semantics = [#tpu.dimension_semantics<parallel>], iteration_bounds = array<i64: 2>, scalar_prefetch = 0 : i64, scratch_operands = 0 : i64, tpu.core_type = #tpu.core_type<tc>, window_params = [{transform_indices = @transform_0, window_bounds = array<i64: 1, 8, 2, 8, 8>}, {pipeline_mode = #tpu.pipeline_mode<synchronous>, transform_indices = @transform_1, window_bounds = array<i64: 8, 36>}, {pipeline_mode = #tpu.pipeline_mode<synchronous>, transform_indices = @transform_2, window_bounds = array<i64: 8, 1>}, {pipeline_mode = #tpu.pipeline_mode<synchronous>, transform_indices = @transform_3, window_bounds = array<i64: 8, 1>}, {transform_indices = @transform_4, window_bounds = array<i64: 1, 8, 64>}]} {
    %c0 = arith.constant 0 : index
    %c0_0 = arith.constant 0 : index
    %c0_1 = arith.constant 0 : index
    %c0_2 = arith.constant 0 : index
    %c0_3 = arith.constant 0 : index
    %0 = vector.load %arg1[%c0, %c0_0, %c0_1, %c0_2, %c0_3] : memref<1x8x2x8x8xbf16, #tpu.memory_space<vmem>>, vector<1x8x2x8x8xbf16>
    %1 = vector.shape_cast %0 : vector<1x8x2x8x8xbf16> to vector<8x2x8x8xbf16>
    %2 = vector.extract_strided_slice %1 {offsets = [0, 0, 0, 0], sizes = [8, 1, 8, 8], strides = [1, 1, 1, 1]} : vector<8x2x8x8xbf16> to vector<8x1x8x8xbf16>
    %3 = vector.shape_cast %2 : vector<8x1x8x8xbf16> to vector<8x8x8xbf16>
    %4 = vector.extract_strided_slice %1 {offsets = [0, 1, 0, 0], sizes = [8, 1, 8, 8], strides = [1, 1, 1, 1]} : vector<8x2x8x8xbf16> to vector<8x1x8x8xbf16>
    %5 = vector.shape_cast %4 : vector<8x1x8x8xbf16> to vector<8x8x8xbf16>
    %6 = arith.maximumf %3, %5 : vector<8x8x8xbf16>
    %7 = vector.extract_strided_slice %6 {offsets = [0, 0, 0], sizes = [8, 8, 4], strides = [1, 1, 1]} : vector<8x8x8xbf16> to vector<8x8x4xbf16>
    %8 = vector.extract_strided_slice %6 {offsets = [0, 0, 4], sizes = [8, 8, 4], strides = [1, 1, 1]} : vector<8x8x8xbf16> to vector<8x8x4xbf16>
    %9 = arith.maximumf %7, %8 : vector<8x8x4xbf16>
    %cst = arith.constant 0.000000e+00 : bf16
    %10 = vector.broadcast %cst : bf16 to vector<1x8x4xbf16>
    %11 = tpu.concatenate %10, %9, %10 in 0 : vector<1x8x4xbf16>, vector<8x8x4xbf16>, vector<1x8x4xbf16> -> vector<10x8x4xbf16>
    %cst_4 = arith.constant 0.000000e+00 : bf16
    %12 = vector.broadcast %cst_4 : bf16 to vector<10x1x4xbf16>
    %13 = tpu.concatenate %12, %11, %12 in 1 : vector<10x1x4xbf16>, vector<10x8x4xbf16>, vector<10x1x4xbf16> -> vector<10x10x4xbf16>
    %14 = vector.extract_strided_slice %13 {offsets = [0, 0, 0], sizes = [8, 8, 4], strides = [1, 1, 1]} : vector<10x10x4xbf16> to vector<8x8x4xbf16>
    %15 = vector.shape_cast %14 : vector<8x8x4xbf16> to vector<64x4xbf16>
    %16 = vector.extract_strided_slice %13 {offsets = [0, 1, 0], sizes = [8, 8, 4], strides = [1, 1, 1]} : vector<10x10x4xbf16> to vector<8x8x4xbf16>
    %17 = vector.shape_cast %16 : vector<8x8x4xbf16> to vector<64x4xbf16>
    %18 = vector.extract_strided_slice %13 {offsets = [0, 2, 0], sizes = [8, 8, 4], strides = [1, 1, 1]} : vector<10x10x4xbf16> to vector<8x8x4xbf16>
    %19 = vector.shape_cast %18 : vector<8x8x4xbf16> to vector<64x4xbf16>
    %20 = vector.extract_strided_slice %13 {offsets = [1, 0, 0], sizes = [8, 8, 4], strides = [1, 1, 1]} : vector<10x10x4xbf16> to vector<8x8x4xbf16>
    %21 = vector.shape_cast %20 : vector<8x8x4xbf16> to vector<64x4xbf16>
    %22 = vector.extract_strided_slice %13 {offsets = [1, 1, 0], sizes = [8, 8, 4], strides = [1, 1, 1]} : vector<10x10x4xbf16> to vector<8x8x4xbf16>
    %23 = vector.shape_cast %22 : vector<8x8x4xbf16> to vector<64x4xbf16>
    %24 = vector.extract_strided_slice %13 {offsets = [1, 2, 0], sizes = [8, 8, 4], strides = [1, 1, 1]} : vector<10x10x4xbf16> to vector<8x8x4xbf16>
    %25 = vector.shape_cast %24 : vector<8x8x4xbf16> to vector<64x4xbf16>
    %26 = vector.extract_strided_slice %13 {offsets = [2, 0, 0], sizes = [8, 8, 4], strides = [1, 1, 1]} : vector<10x10x4xbf16> to vector<8x8x4xbf16>
    %27 = vector.shape_cast %26 : vector<8x8x4xbf16> to vector<64x4xbf16>
    %28 = vector.extract_strided_slice %13 {offsets = [2, 1, 0], sizes = [8, 8, 4], strides = [1, 1, 1]} : vector<10x10x4xbf16> to vector<8x8x4xbf16>
    %29 = vector.shape_cast %28 : vector<8x8x4xbf16> to vector<64x4xbf16>
    %30 = vector.extract_strided_slice %13 {offsets = [2, 2, 0], sizes = [8, 8, 4], strides = [1, 1, 1]} : vector<10x10x4xbf16> to vector<8x8x4xbf16>
    %31 = vector.shape_cast %30 : vector<8x8x4xbf16> to vector<64x4xbf16>
    %32 = tpu.concatenate %15, %17, %19, %21, %23, %25, %27, %29, %31 in 1 : vector<64x4xbf16>, vector<64x4xbf16>, vector<64x4xbf16>, vector<64x4xbf16>, vector<64x4xbf16>, vector<64x4xbf16>, vector<64x4xbf16>, vector<64x4xbf16>, vector<64x4xbf16> -> vector<64x36xbf16>
    %c0_5 = arith.constant 0 : index
    %c0_6 = arith.constant 0 : index
    %33 = vector.load %arg2[%c0_5, %c0_6] : memref<8x36xbf16, #tpu.memory_space<vmem>>, vector<8x36xbf16>
    %cst_7 = arith.constant dense<0.000000e+00> : vector<8x64xf32>
    %34 = tpu.matmul %33, %32, %cst_7 {dimension_numbers = #tpu.dot_dimension_numbers<[1], [1], [0], [0], [0, 0, 1, 0], [], []>} : vector<8x36xbf16>, vector<64x36xbf16>, vector<8x64xf32> -> vector<8x64xf32>
    %c0_8 = arith.constant 0 : index
    %c0_9 = arith.constant 0 : index
    %35 = vector.load %arg3[%c0_8, %c0_9] : memref<8x1xf32, #tpu.memory_space<vmem>>, vector<8x1xf32>
    %36 = vector.broadcast %35 : vector<8x1xf32> to vector<8x64xf32>
    %37 = arith.mulf %34, %36 : vector<8x64xf32>
    %c0_10 = arith.constant 0 : index
    %c0_11 = arith.constant 0 : index
    %38 = vector.load %arg4[%c0_10, %c0_11] : memref<8x1xf32, #tpu.memory_space<vmem>>, vector<8x1xf32>
    %39 = vector.broadcast %38 : vector<8x1xf32> to vector<8x64xf32>
    %40 = arith.addf %37, %39 : vector<8x64xf32>
    %cst_12 = arith.constant 0.000000e+00 : f32
    %41 = vector.broadcast %cst_12 : f32 to vector<8x64xf32>
    %42 = arith.maximumf %40, %41 : vector<8x64xf32>
    %c0_13 = arith.constant 0 : index
    %c0_14 = arith.constant 0 : index
    %c0_15 = arith.constant 0 : index
    %43 = vector.load %arg5[%c0_13, %c0_14, %c0_15] : memref<1x8x64xf32, #tpu.memory_space<vmem>>, vector<1x8x64xf32>
    %44 = vector.shape_cast %43 : vector<1x8x64xf32> to vector<8x64xf32>
    %45 = vector.shape_cast %42 : vector<8x64xf32> to vector<1x8x64xf32>
    tpu.vector_store %arg5[%c0_13, %c0_14, %c0_15], %45 {strides = array<i32>} : memref<1x8x64xf32, #tpu.memory_space<vmem>>, vector<1x8x64xf32>,
    return
  }
  func.func @transform_0(%arg0: i32) -> (i32, i32, i32, i32, i32) {
    %c0_i32 = arith.constant 0 : i32
    %c0_i32_0 = arith.constant 0 : i32
    %c0_i32_1 = arith.constant 0 : i32
    %c0_i32_2 = arith.constant 0 : i32
    %c0_i32_3 = arith.constant 0 : i32
    return %arg0, %c0_i32, %c0_i32_0, %c0_i32_1, %c0_i32_2 : i32, i32, i32, i32, i32
  }
  func.func @transform_1(%arg0: i32) -> (i32, i32) {
    %c0_i32 = arith.constant 0 : i32
    %c0_i32_0 = arith.constant 0 : i32
    %c0_i32_1 = arith.constant 0 : i32
    return %c0_i32, %c0_i32_0 : i32, i32
  }
  func.func @transform_2(%arg0: i32) -> (i32, i32) {
    %c0_i32 = arith.constant 0 : i32
    %c0_i32_0 = arith.constant 0 : i32
    %c0_i32_1 = arith.constant 0 : i32
    return %c0_i32, %c0_i32_0 : i32, i32
  }
  func.func @transform_3(%arg0: i32) -> (i32, i32) {
    %c0_i32 = arith.constant 0 : i32
    %c0_i32_0 = arith.constant 0 : i32
    %c0_i32_1 = arith.constant 0 : i32
    return %c0_i32, %c0_i32_0 : i32, i32
  }
  func.func @transform_4(%arg0: i32) -> (i32, i32, i32) {
    %c0_i32 = arith.constant 0 : i32
    %c0_i32_0 = arith.constant 0 : i32
    %c0_i32_1 = arith.constant 0 : i32
    return %arg0, %c0_i32, %c0_i32_0 : i32, i32, i32
  }
}

</mosaic_0001>

<llo_original>
// kernel: tpu_custom_call.1
$region0: #{tpu_custom_call.1}
  #allocation0 [shape = 'u32[]', space=smem, size = 0x4, offset = 0x4, fixed_abs, tag = 'smem constant byte address 0x4 - core index']
  #allocation1 [shape = 'u32[72,128]{1,0:T(1,128)}', space=vmem, size = 0x9000, scoped, tag = 'internal scratch']
  %s0 = inlined_call_operand.hbm [shape: bf16[2,8,2,8,8], index: 0, kind: input, shape index: {}]
  %s1 = inlined_call_operand.vmem [shape: bf16[8,36], index: 1, kind: input, shape index: {}]
  %s2 = inlined_call_operand.vmem [shape: f32[8,1], index: 2, kind: input, shape index: {}]
  %s3 = inlined_call_operand.vmem [shape: f32[8,1], index: 3, kind: input, shape index: {}]
  %s4 = inlined_call_operand.hbm [shape: f32[2,8,64], index: 4, kind: output, shape index: {}]
  %s5 = sld [smem:[#allocation0]]
  $region53: #{tpu_custom_call.1} parent=0
    _
  %s7 = ssub.s32 1, %s5
  %s8 = scalar_select 0, %s7, %s5
  $region1: #{tpu_custom_call.1} parent=0
    #allocation2 [shape = 'u8[65536]{0}', space=vmem, size = 0x10000, scoped, tag = 'input window, operand 0']
    #allocation3 [shape = 's32[2]{0}', space=sflag, size = 0x8, scoped, tag = 'scoped memory for tpu_custom_call.1']
    #allocation4 [shape = 's32[2]{0}', space=sflag, size = 0x8, scoped, tag = 'scoped memory for tpu_custom_call.1']
    #allocation5 [shape = 'u8[8192]{0}', space=vmem, size = 0x2000, scoped, tag = 'output window, operand 0']
    %9 = vsyncpa [#allocation3], 0
    %s10 = scalar_lea.sflag [#allocation3], 1
    %11 = vsyncpa %s10, 0
    %12 = vsyncpa [#allocation4], 0
    %s13 = scalar_lea.sflag [#allocation4], 1
    %14 = vsyncpa %s13, 0
    loop: start=0, step=1, limit=4
    $region2: #{tpu_custom_call.1} parent=1 // loop_pre_header
      _
    $region3: #{tpu_custom_call.1} parent=1 // loop_header
      %s16 = sphi 0, %s20
      %p17 = scmp.ge.s32.totalorder %s16, 4
      %s26 = sphi 0, %s28
      %s29 = sphi 0, %s26
      %s30 = sphi 0, %s29
      %s46 = sphi 0, %s30
      %s50 = sphi 0, %s50
      %s52 = sphi 0, %s50
      %s53 = sphi 0, %s52
      %s67 = sphi 0, %s53
      %s71 = sphi 0, %s71
      %s73 = sphi 0, %s71
      %s74 = sphi 0, %s73
      %s88 = sphi 0, %s74
      %s92 = sphi 0, %s92
      %s94 = sphi 0, %s92
      %s95 = sphi 0, %s94
      %s109 = sphi 0, %s95
      %s115 = sphi 0, %s117
      %s118 = sphi 0, %s115
      %s119 = sphi 0, %s118
      %s135 = sphi 0, %s119
    $region4: #{tpu_custom_call.1} parent=1 // loop_header_branch
      %19 = sbr.rel (%p17) target = $region8
    $region5: #{tpu_custom_call.1} parent=1 // loop_body
      %s21 = ssub.s32 %s16, 1
      %s22 = ssub.s32 %s16, 2
      %s23 = sadd.s32 %s16, 1
      %s24 = ssub.s32 %s16, %s23
      %p25 = scmp.eq.s32.totalorder %s24, 0
      %s27 = sadd.s32 %s26, 1
      %s28 = scalar_select %p25, %s26, %s27
      %p31 = pneg %p25
      %p32 = scmp.eq.s32.totalorder %s16, 1
      %p33 = por %p31, %p32
      %p34 = scmp.ne.s32.totalorder %s26, %s29
      %p35 = scmp.eq.s32.totalorder %s16, 0
      %p36 = por %p34, %p35
      %p37 = scmp.ne.s32.totalorder %s26, %s29
      %p38 = scmp.eq.s32.totalorder %s21, 1
      %p39 = por %p37, %p38
      %p40 = scmp.ne.s32.totalorder %s29, %s30
      %p41 = scmp.eq.s32.totalorder %s21, 0
      %p42 = por %p40, %p41
      %p43 = scmp.ne.s32.totalorder %s29, %s30
      %p44 = scmp.eq.s32.totalorder %s22, 1
      %p45 = por %p43, %p44
      %p47 = scmp.ne.s32.totalorder %s30, %s46
      %p48 = scmp.eq.s32.totalorder %s22, 0
      %p49 = por %p47, %p48
      %s51 = sadd.s32 %s50, 1
      %p54 = scmp.eq.s32.totalorder %s16, 1
      %p55 = scmp.ne.s32.totalorder %s50, %s52
      %p56 = scmp.eq.s32.totalorder %s16, 0
      %p57 = por %p55, %p56
      %p58 = scmp.ne.s32.totalorder %s50, %s52
      %p59 = scmp.eq.s32.totalorder %s21, 1
      %p60 = por %p58, %p59
      %p61 = scmp.ne.s32.totalorder %s52, %s53
      %p62 = scmp.eq.s32.totalorder %s21, 0
      %p63 = por %p61, %p62
      %p64 = scmp.ne.s32.totalorder %s52, %s53
      %p65 = scmp.eq.s32.totalorder %s22, 1
      %p66 = por %p64, %p65
      %p68 = scmp.ne.s32.totalorder %s53, %s67
      %p69 = scmp.eq.s32.totalorder %s22, 0
      %p70 = por %p68, %p69
      %s72 = sadd.s32 %s71, 1
      %p75 = scmp.eq.s32.totalorder %s16, 1
      %p76 = scmp.ne.s32.totalorder %s71, %s73
      %p77 = scmp.eq.s32.totalorder %s16, 0
      %p78 = por %p76, %p77
      %p79 = scmp.ne.s32.totalorder %s71, %s73
      %p80 = scmp.eq.s32.totalorder %s21, 1
      %p81 = por %p79, %p80
      %p82 = scmp.ne.s32.totalorder %s73, %s74
      %p83 = scmp.eq.s32.totalorder %s21, 0
      %p84 = por %p82, %p83
      %p85 = scmp.ne.s32.totalorder %s73, %s74
      %p86 = scmp.eq.s32.totalorder %s22, 1
      %p87 = por %p85, %p86
      %p89 = scmp.ne.s32.totalorder %s74, %s88
      %p90 = scmp.eq.s32.totalorder %s22, 0
      %p91 = por %p89, %p90
      %s93 = sadd.s32 %s92, 1
      %p96 = scmp.eq.s32.totalorder %s16, 1
      %p97 = scmp.ne.s32.totalorder %s92, %s94
      %p98 = scmp.eq.s32.totalorder %s16, 0
      %p99 = por %p97, %p98
      %p100 = scmp.ne.s32.totalorder %s92, %s94
      %p101 = scmp.eq.s32.totalorder %s21, 1
      %p102 = por %p100, %p101
      %p103 = scmp.ne.s32.totalorder %s94, %s95
      %p104 = scmp.eq.s32.totalorder %s21, 0
      %p105 = por %p103, %p104
      %p106 = scmp.ne.s32.totalorder %s94, %s95
      %p107 = scmp.eq.s32.totalorder %s22, 1
      %p108 = por %p106, %p107
      %p110 = scmp.ne.s32.totalorder %s95, %s109
      %p111 = scmp.eq.s32.totalorder %s22, 0
      %p112 = por %p110, %p111
      %s113 = ssub.s32 %s16, %s23
      %p114 = scmp.eq.s32.totalorder %s113, 0
      %s116 = sadd.s32 %s115, 1
      %s117 = scalar_select %p114, %s115, %s116
      %p120 = pneg %p114
      %p121 = scmp.eq.s32.totalorder %s16, 1
      %p122 = por %p120, %p121
      %p123 = scmp.ne.s32.totalorder %s115, %s118
      %p124 = scmp.eq.s32.totalorder %s16, 0
      %p125 = por %p123, %p124
      %p126 = scmp.ne.s32.totalorder %s115, %s118
      %p127 = scmp.eq.s32.totalorder %s21, 1
      %p128 = por %p126, %p127
      %p129 = scmp.ne.s32.totalorder %s118, %s119
      %p130 = scmp.eq.s32.totalorder %s21, 0
      %p131 = por %p129, %p130
      %p132 = scmp.ne.s32.totalorder %s118, %s119
      %p133 = scmp.eq.s32.totalorder %s22, 1
      %p134 = por %p132, %p133
      %p136 = scmp.ne.s32.totalorder %s119, %s135
      %p137 = scmp.eq.s32.totalorder %s22, 0
      %p138 = por %p136, %p137
      %p139 = scmp.le.s32.totalorder 1, %s16
      %p140 = scmp.lt.s32.totalorder %s16, 3
      %p141 = pnand %p139, %p140
      %p142 = pneg %p141
      // Predicated region
      $region9: #{tpu_custom_call.1} parent=5 // pred_check
        _
      $region10: #{tpu_custom_call.1} parent=5 // pred_check_branch
        %144 = sbr.rel (%p141) target = $region12
      $region11: #{tpu_custom_call.1} parent=5 // pred_region
        %s145 = ssub.s32 %s16, 1
        // Predicated region
        $region13: #{tpu_custom_call.1} parent=11 // pred_check
          %p146 = pneg %p63
        $region14: #{tpu_custom_call.1} parent=11 // pred_check_branch
          %148 = sbr.rel (%p146) target = $region16
        $region15: #{tpu_custom_call.1} parent=11 // pred_region
          _
        $region16: #{tpu_custom_call.1} parent=11 // pred_fallthru
          _
        // Predicated region
        $region17: #{tpu_custom_call.1} parent=11 // pred_check
          %p149 = pneg %p84
        $region18: #{tpu_custom_call.1} parent=11 // pred_check_branch
          %151 = sbr.rel (%p149) target = $region20
        $region19: #{tpu_custom_call.1} parent=11 // pred_region
          _
        $region20: #{tpu_custom_call.1} parent=11 // pred_fallthru
          _
        // Predicated region
        $region21: #{tpu_custom_call.1} parent=11 // pred_check
          %p152 = pneg %p105
        $region22: #{tpu_custom_call.1} parent=11 // pred_check_branch
          %154 = sbr.rel (%p152) target = $region24
        $region23: #{tpu_custom_call.1} parent=11 // pred_region
          _
        $region24: #{tpu_custom_call.1} parent=11 // pred_fallthru
          _
      $region12: #{tpu_custom_call.1} parent=5 // pred_fallthru
        _
      %p155 = scmp.lt.s32.totalorder %s16, 2
      // Predicated region
      $region25: #{tpu_custom_call.1} parent=5 // pred_check
        %p156 = pneg %p155
      $region26: #{tpu_custom_call.1} parent=5 // pred_check_branch
        %158 = sbr.rel (%p156) target = $region28
      $region27: #{tpu_custom_call.1} parent=5 // pred_region
        // Predicated region
        $region29: #{tpu_custom_call.1} parent=27 // pred_check
          %p159 = pneg %p36
        $region30: #{tpu_custom_call.1} parent=27 // pred_check_branch
          %161 = sbr.rel (%p159) target = $region32
        $region31: #{tpu_custom_call.1} parent=27 // pred_region
          %s162 = sand.u32 %s26, 1
          %s163 = scalar_lea.sflag [#allocation3], %s162
          %s164 = sand.u32 %s26, 1
          %s165 = smul.addr %s164, 64
          %s166 = scalar_lea.vmem [#allocation2], %s165
          %168 = vsyncadd %s163, 0
          %s169 = smul.addr %s16, 16
          %s170 = smul.addr %s169, 4
          %s171 = scalar_lea.hbm %s0, %s170
          %s172 = sshll.u32 %s171, 4
          %s173 = int_to_ptr.hbm [resolvable:$true] %s172
          %s174 = sshll.u32 %s166, 4
          %s175 = int_to_ptr.vmem [resolvable:$true] %s174
          %180 = dma.hbm_to_vmem [thread:$0]  %s173, 1024, %s175, %s163, 64, 64, 4
        $region32: #{tpu_custom_call.1} parent=27 // pred_fallthru
          _
      $region28: #{tpu_custom_call.1} parent=5 // pred_fallthru
        _
      %p181 = scmp.le.s32.totalorder 1, %s16
      %p182 = scmp.lt.s32.totalorder %s16, 3
      %p183 = pnand %p181, %p182
      %p184 = pneg %p183
      // Predicated region
      $region33: #{tpu_custom_call.1} parent=5 // pred_check
        _
      $region34: #{tpu_custom_call.1} parent=5 // pred_check_branch
        %186 = sbr.rel (%p183) target = $region36
      $region35: #{tpu_custom_call.1} parent=5 // pred_region
        %s187 = ssub.s32 %s16, 1
        %s188 = sand.u32 %s29, 1
        %s189 = scalar_lea.sflag [#allocation3], %s188
        %s190 = sand.u32 %s29, 1
        %s191 = smul.addr %s190, 64
        %s192 = scalar_lea.vmem [#allocation2], %s191
        // Predicated region
        $region37: #{tpu_custom_call.1} parent=35 // pred_check
          %p193 = pneg %p42
        $region38: #{tpu_custom_call.1} parent=35 // pred_check_branch
          %195 = sbr.rel (%p193) target = $region40
        $region39: #{tpu_custom_call.1} parent=35 // pred_region
          %197 = dma.done %s189, 1024
        $region40: #{tpu_custom_call.1} parent=35 // pred_fallthru
          _
        %s198 = sand.u32 %s29, 1
        %s199 = scalar_lea.sflag [#allocation3], %s198
        %s200 = sand.u32 %s29, 1
        %s201 = smul.addr %s200, 64
        %s202 = scalar_lea.vmem [#allocation2], %s201
        %p203 = pneg %p42
        %p204 = pneg %p39
        %p205 = pneg %p63
        %p206 = pneg %p60
        %p207 = pneg %p84
        %p208 = pneg %p81
        %p209 = pneg %p105
        %p210 = pneg %p102
        %p211 = pneg %p131
        %p212 = pneg %p128
        %s213 = sand.u32 %s118, 1
        %s214 = scalar_lea.sflag [#allocation4], %s213
        %s215 = sand.u32 %s118, 1
        %s216 = smul.addr %s215, 8
        %s217 = scalar_lea.vmem [#allocation5], %s216
        %v219 = vld [vmem:[%s192] sm:$0xf]
        %v220 = vld [vmem:[%s192 + $0x4] sm:$0xf]
        %v221 = vld [vmem:[%s192 + $0x8] sm:$0xf]
        %v222 = vld [vmem:[%s192 + $0xc] sm:$0xf]
        %v223 = vld [vmem:[%s192 + $0x10] sm:$0xf]
        %v224 = vld [vmem:[%s192 + $0x14] sm:$0xf]
        %v225 = vld [vmem:[%s192 + $0x18] sm:$0xf]
        %v226 = vld [vmem:[%s192 + $0x1c] sm:$0xf]
        %v227 = vld [vmem:[%s192 + $0x20] sm:$0xf]
        %v228 = vld [vmem:[%s192 + $0x24] sm:$0xf]
        %v229 = vld [vmem:[%s192 + $0x28] sm:$0xf]
        %v230 = vld [vmem:[%s192 + $0x2c] sm:$0xf]
        %v231 = vld [vmem:[%s192 + $0x30] sm:$0xf]
        %v232 = vld [vmem:[%s192 + $0x34] sm:$0xf]
        %v233 = vld [vmem:[%s192 + $0x38] sm:$0xf]
        %v234 = vld [vmem:[%s192 + $0x3c] sm:$0xf]
        %v235 = vunpack.c.l.bf16 %v219
        %v236 = vunpack.c.l.bf16 %v221
        %v237 = vunpack.c.l.bf16 %v223
        %v238 = vunpack.c.l.bf16 %v225
        %v239 = vunpack.c.l.bf16 %v227
        %v240 = vunpack.c.l.bf16 %v229
        %v241 = vunpack.c.l.bf16 %v231
        %v242 = vunpack.c.l.bf16 %v233
        %v243 = vunpack.c.l.bf16 %v220
        %v244 = vunpack.c.l.bf16 %v222
        %v245 = vunpack.c.l.bf16 %v224
        %v246 = vunpack.c.l.bf16 %v226
        %v247 = vunpack.c.l.bf16 %v228
        %v248 = vunpack.c.l.bf16 %v230
        %v249 = vunpack.c.l.bf16 %v232
        %v250 = vunpack.c.l.bf16 %v234
        %v251 = vmax.f32 %v235, %v243
        %v252 = vmax.f32 %v236, %v244
        %v253 = vmax.f32 %v237, %v245
        %v254 = vmax.f32 %v238, %v246
        %v255 = vmax.f32 %v239, %v247
        %v256 = vmax.f32 %v240, %v248
        %v257 = vmax.f32 %v241, %v249
        %v258 = vmax.f32 %v242, %v250
        %v259 = vpack.c.bf16 %v251, %v251
        %v260 = vpack.c.bf16 %v252, %v252
        %v261 = vpack.c.bf16 %v253, %v253
        %v262 = vpack.c.bf16 %v254, %v254
        %v263 = vpack.c.bf16 %v255, %v255
        %v264 = vpack.c.bf16 %v256, %v256
        %v265 = vpack.c.bf16 %v257, %v257
        %v266 = vpack.c.bf16 %v258, %v258
        %v267 = vunpack.c.l.bf16 %v259
        %v268 = vunpack.c.l.bf16 %v260
        %v269 = vunpack.c.l.bf16 %v261
        %v270 = vunpack.c.l.bf16 %v262
        %v271 = vunpack.c.l.bf16 %v263
        %v272 = vunpack.c.l.bf16 %v264
        %v273 = vunpack.c.l.bf16 %v265
        %v274 = vunpack.c.l.bf16 %v266
        %283 = vrot.lane.b32.xlu0 %v267, 124
        %v284 = vpop.permute.xlu0 %283
        %285 = vrot.lane.b32.xlu0 %v268, 124
        %v286 = vpop.permute.xlu0 %285
        %287 = vrot.lane.b32.xlu0 %v269, 124
        %v288 = vpop.permute.xlu0 %287
        %289 = vrot.lane.b32.xlu0 %v270, 124
        %v290 = vpop.permute.xlu0 %289
        %291 = vrot.lane.b32.xlu0 %v271, 124
        %v292 = vpop.permute.xlu0 %291
        %293 = vrot.lane.b32.xlu0 %v272, 124
        %v294 = vpop.permute.xlu0 %293
        %295 = vrot.lane.b32.xlu0 %v273, 124
        %v296 = vpop.permute.xlu0 %295
        %297 = vrot.lane.b32.xlu0 %v274, 124
        %v298 = vpop.permute.xlu0 %297
        %v307 = vmax.f32 %v267, %v284
        %v308 = vmax.f32 %v268, %v286
        %v309 = vmax.f32 %v269, %v288
        %v310 = vmax.f32 %v270, %v290
        %v311 = vmax.f32 %v271, %v292
        %v312 = vmax.f32 %v272, %v294
        %v313 = vmax.f32 %v273, %v296
        %v314 = vmax.f32 %v274, %v298
        %v315 = vpack.c.bf16 %v307, %v307
        %v316 = vpack.c.bf16 %v308, %v308
        %v317 = vpack.c.bf16 %v309, %v309
        %v318 = vpack.c.bf16 %v310, %v310
        %v319 = vpack.c.bf16 %v311, %v311
        %v320 = vpack.c.bf16 %v312, %v312
        %v321 = vpack.c.bf16 %v313, %v313
        %v322 = vpack.c.bf16 %v314, %v314
        %v324 = vshrl.u32 0, 16
        %v326 = vrot.slane %v324, 7
        %v327 = vshll.u32 0, 16
        %v329 = vor.u32 %v326, %v327
        %v331 = vshrl.u32 %v315, 16
        %v333 = vrot.slane %v331, 7
        %v334 = vshll.u32 %v315, 16
        %v336 = vor.u32 %v333, %v334
        %v338 = vshrl.u32 %v316, 16
        %v340 = vrot.slane %v338, 7
        %v341 = vshll.u32 %v316, 16
        %v343 = vor.u32 %v340, %v341
        %v345 = vshrl.u32 %v317, 16
        %v347 = vrot.slane %v345, 7
        %v348 = vshll.u32 %v317, 16
        %v350 = vor.u32 %v347, %v348
        %v352 = vshrl.u32 %v318, 16
        %v354 = vrot.slane %v352, 7
        %v355 = vshll.u32 %v318, 16
        %v357 = vor.u32 %v354, %v355
        %v359 = vshrl.u32 %v319, 16
        %v361 = vrot.slane %v359, 7
        %v362 = vshll.u32 %v319, 16
        %v364 = vor.u32 %v361, %v362
        %v366 = vshrl.u32 %v320, 16
        %v368 = vrot.slane %v366, 7
        %v369 = vshll.u32 %v320, 16
        %v371 = vor.u32 %v368, %v369
        %v373 = vshrl.u32 %v321, 16
        %v375 = vrot.slane %v373, 7
        %v376 = vshll.u32 %v321, 16
        %v378 = vor.u32 %v375, %v376
        %v380 = vshrl.u32 %v322, 16
        %v382 = vrot.slane %v380, 7
        %v383 = vshll.u32 %v322, 16
        %v385 = vor.u32 %v382, %v383
        %vm395 = vcmask 1040384
        %vm396 = vsmask.f32 256
        %vm397 = vmand %vm395, %vm396
        %v398 = vsel %vm397, 0, %v329
        %v399 = vsel %vm397, 0, %v336
        %v400 = vsel %vm397, 0, %v343
        %v401 = vsel %vm397, 0, %v350
        %v402 = vsel %vm397, 0, %v357
        %v403 = vsel %vm397, 0, %v364
        %v404 = vsel %vm397, 0, %v371
        %v405 = vsel %vm397, 0, %v378
        %v406 = vsel %vm397, 0, %v385
        %vm407 = vcmask 1044480
        %vm408 = vsmask.f32 4352
        %vm409 = vmand %vm407, %vm408
        %v410 = vsel %vm409, %v398, 0
        %v411 = vsel %vm409, %v399, 0
        %v412 = vsel %vm409, %v400, 0
        %v413 = vsel %vm409, %v401, 0
        %v414 = vsel %vm409, %v402, 0
        %v415 = vsel %vm409, %v403, 0
        %v416 = vsel %vm409, %v404, 0
        %v417 = vsel %vm409, %v405, 0
        %v418 = vsel %vm409, %v406, 0
        %v427 = vunpack.c.l.b16 %v410
        %v428 = vunpack.c.h.b16 %v410
        %v429 = vunpack.c.l.b16 %v411
        %v430 = vunpack.c.h.b16 %v411
        %v431 = vunpack.c.l.b16 %v412
        %v432 = vunpack.c.h.b16 %v412
        %v433 = vunpack.c.l.b16 %v413
        %v434 = vunpack.c.h.b16 %v413
        %v435 = vunpack.c.l.b16 %v414
        %v436 = vunpack.c.h.b16 %v414
        %v437 = vunpack.c.l.b16 %v415
        %v438 = vunpack.c.h.b16 %v415
        %v439 = vunpack.c.l.b16 %v416
        %v440 = vunpack.c.h.b16 %v416
        %v441 = vunpack.c.l.b16 %v417
        %v442 = vunpack.c.h.b16 %v417
        %v443 = vpack.c.b16 %v427, %v427
        %v444 = vpack.c.b16 %v428, %v428
        %v445 = vpack.c.b16 %v429, %v429
        %v446 = vpack.c.b16 %v430, %v430
        %v447 = vpack.c.b16 %v431, %v431
        %v448 = vpack.c.b16 %v432, %v432
        %v449 = vpack.c.b16 %v433, %v433
        %v450 = vpack.c.b16 %v434, %v434
        %v451 = vpack.c.b16 %v435, %v435
        %v452 = vpack.c.b16 %v436, %v436
        %v453 = vpack.c.b16 %v437, %v437
        %v454 = vpack.c.b16 %v438, %v438
        %v455 = vpack.c.b16 %v439, %v439
        %v456 = vpack.c.b16 %v440, %v440
        %v457 = vpack.c.b16 %v441, %v441
        %v458 = vpack.c.b16 %v442, %v442
        %vm459 = vsmask.f32 3328
        %vm460 = vsmask.f32 7440
        %vm461 = vmor %vm459, %vm460
        %v463 = vshrl.u32 %v443, 16
        %v465 = vrot.slane %v463, 4
        %v466 = vshll.u32 %v443, 16
        %v468 = vrot.slane %v466, 5
        %v469 = vor.u32 %v465, %v468
        %v470 = vrot.slane %v469, 4
        %v472 = vshll.u32 %v444, 16
        %v474 = vrot.slane %v472, 5
        %v475 = vsel %vm461, %v470, %v474
        %v477 = vshrl.u32 %v445, 16
        %v479 = vrot.slane %v477, 4
        %v480 = vshll.u32 %v445, 16
        %v482 = vrot.slane %v480, 5
        %v483 = vor.u32 %v479, %v482
        %v484 = vrot.slane %v483, 4
        %v486 = vshll.u32 %v446, 16
        %v488 = vrot.slane %v486, 5
        %v489 = vsel %vm461, %v484, %v488
        %v491 = vshrl.u32 %v447, 16
        %v493 = vrot.slane %v491, 4
        %v494 = vshll.u32 %v447, 16
        %v496 = vrot.slane %v494, 5
        %v497 = vor.u32 %v493, %v496
        %v498 = vrot.slane %v497, 4
        %v500 = vshll.u32 %v448, 16
        %v502 = vrot.slane %v500, 5
        %v503 = vsel %vm461, %v498, %v502
        %v505 = vshrl.u32 %v449, 16
        %v507 = vrot.slane %v505, 4
        %v508 = vshll.u32 %v449, 16
        %v510 = vrot.slane %v508, 5
        %v511 = vor.u32 %v507, %v510
        %v512 = vrot.slane %v511, 4
        %v514 = vshll.u32 %v450, 16
        %v516 = vrot.slane %v514, 5
        %v517 = vsel %vm461, %v512, %v516
        %v519 = vshrl.u32 %v451, 16
        %v521 = vrot.slane %v519, 4
        %v522 = vshll.u32 %v451, 16
        %v524 = vrot.slane %v522, 5
        %v525 = vor.u32 %v521, %v524
        %v526 = vrot.slane %v525, 4
        %v528 = vshll.u32 %v452, 16
        %v530 = vrot.slane %v528, 5
        %v531 = vsel %vm461, %v526, %v530
        %v533 = vshrl.u32 %v453, 16
        %v535 = vrot.slane %v533, 4
        %v536 = vshll.u32 %v453, 16
        %v538 = vrot.slane %v536, 5
        %v539 = vor.u32 %v535, %v538
        %v540 = vrot.slane %v539, 4
        %v542 = vshll.u32 %v454, 16
        %v544 = vrot.slane %v542, 5
        %v545 = vsel %vm461, %v540, %v544
        %v547 = vshrl.u32 %v455, 16
        %v549 = vrot.slane %v547, 4
        %v550 = vshll.u32 %v455, 16
        %v552 = vrot.slane %v550, 5
        %v553 = vor.u32 %v549, %v552
        %v554 = vrot.slane %v553, 4
        %v556 = vshll.u32 %v456, 16
        %v558 = vrot.slane %v556, 5
        %v559 = vsel %vm461, %v554, %v558
        %v561 = vshrl.u32 %v457, 16
        %v563 = vrot.slane %v561, 4
        %v564 = vshll.u32 %v457, 16
        %v566 = vrot.slane %v564, 5
        %v567 = vor.u32 %v563, %v566
        %v568 = vrot.slane %v567, 4
        %v570 = vshll.u32 %v458, 16
        %v572 = vrot.slane %v570, 5
        %v573 = vsel %vm461, %v568, %v572
        %vm574 = vcmask 1042432
        %vm575 = vcmask 1046532
        %vm576 = vmor %vm574, %vm575
        %v577 = vrot.slane %v443, 5
        %v578 = vrot.slane %v577, 4
        %v579 = vrot.slane %v444, 5
        %v580 = vsel %vm576, %v578, %v579
        %v581 = vrot.slane %v445, 5
        %v582 = vrot.slane %v581, 4
        %v583 = vrot.slane %v446, 5
        %v584 = vsel %vm576, %v582, %v583
        %v585 = vrot.slane %v447, 5
        %v586 = vrot.slane %v585, 4
        %v587 = vrot.slane %v448, 5
        %v588 = vsel %vm576, %v586, %v587
        %v589 = vrot.slane %v449, 5
        %v590 = vrot.slane %v589, 4
        %v591 = vrot.slane %v450, 5
        %v592 = vsel %vm576, %v590, %v591
        %v593 = vrot.slane %v451, 5
        %v594 = vrot.slane %v593, 4
        %v595 = vrot.slane %v452, 5
        %v596 = vsel %vm576, %v594, %v595
        %v597 = vrot.slane %v453, 5
        %v598 = vrot.slane %v597, 4
        %v599 = vrot.slane %v454, 5
        %v600 = vsel %vm576, %v598, %v599
        %v601 = vrot.slane %v455, 5
        %v602 = vrot.slane %v601, 4
        %v603 = vrot.slane %v456, 5
        %v604 = vsel %vm576, %v602, %v603
        %v605 = vrot.slane %v457, 5
        %v606 = vrot.slane %v605, 4
        %v607 = vrot.slane %v458, 5
        %v608 = vsel %vm576, %v606, %v607
        %v610 = vunpack.c.l.b16 %v418
        %v611 = vunpack.c.h.b16 %v418
        %v612 = vpack.c.b16 %v610, %v610
        %v613 = vpack.c.b16 %v611, %v611
        %v615 = vshrl.u32 %v612, 16
        %v617 = vrot.slane %v615, 4
        %v618 = vshll.u32 %v612, 16
        %v620 = vrot.slane %v618, 5
        %v621 = vor.u32 %v617, %v620
        %v622 = vrot.slane %v621, 4
        %v624 = vshll.u32 %v613, 16
        %v626 = vrot.slane %v624, 5
        %v627 = vsel %vm461, %v622, %v626
        %v628 = vrot.slane %v612, 5
        %v629 = vrot.slane %v628, 4
        %v630 = vrot.slane %v613, 5
        %v631 = vsel %vm576, %v629, %v630
        %v632 = vpack.c.b16 %v429, %v427
        %v633 = vpack.c.b16 %v433, %v431
        %v634 = vpack.c.b16 %v437, %v435
        %v635 = vpack.c.b16 %v441, %v439
        %v636 = vunpack.c.l.b16 %v475
        %v637 = vunpack.c.l.b16 %v489
        %v638 = vunpack.c.l.b16 %v503
        %v639 = vunpack.c.l.b16 %v517
        %v640 = vunpack.c.l.b16 %v531
        %v641 = vunpack.c.l.b16 %v545
        %v642 = vunpack.c.l.b16 %v559
        %v643 = vunpack.c.l.b16 %v573
        %v644 = vpack.c.b16 %v637, %v636
        %v645 = vpack.c.b16 %v639, %v638
        %v646 = vpack.c.b16 %v641, %v640
        %v647 = vpack.c.b16 %v643, %v642
        %648 = vrot.lane.b32.xlu0 %v644, 4
        %v649 = vpop.permute.xlu0 %648
        %650 = vrot.lane.b32.xlu0 %v645, 4
        %v651 = vpop.permute.xlu0 %650
        %652 = vrot.lane.b32.xlu0 %v646, 4
        %v653 = vpop.permute.xlu0 %652
        %654 = vrot.lane.b32.xlu0 %v647, 4
        %v655 = vpop.permute.xlu0 %654
        %v656 = vunpack.c.l.b16 %v580
        %v657 = vunpack.c.l.b16 %v584
        %v658 = vunpack.c.l.b16 %v588
        %v659 = vunpack.c.l.b16 %v592
        %v660 = vunpack.c.l.b16 %v596
        %v661 = vunpack.c.l.b16 %v600
        %v662 = vunpack.c.l.b16 %v604
        %v663 = vunpack.c.l.b16 %v608
        %v664 = vpack.c.b16 %v657, %v656
        %v665 = vpack.c.b16 %v659, %v658
        %v666 = vpack.c.b16 %v661, %v660
        %v667 = vpack.c.b16 %v663, %v662
        %668 = vrot.lane.b32.xlu0 %v664, 8
        %v669 = vpop.permute.xlu0 %668
        %670 = vrot.lane.b32.xlu0 %v665, 8
        %v671 = vpop.permute.xlu0 %670
        %672 = vrot.lane.b32.xlu0 %v666, 8
        %v673 = vpop.permute.xlu0 %672
        %674 = vrot.lane.b32.xlu0 %v667, 8
        %v675 = vpop.permute.xlu0 %674
        %v676 = vpack.c.b16 %v431, %v429
        %v677 = vpack.c.b16 %v435, %v433
        %v678 = vpack.c.b16 %v439, %v437
        %v679 = vpack.c.b16 %v610, %v441
        %680 = vrot.lane.b32.xlu0 %v676, 12
        %v681 = vpop.permute.xlu0 %680
        %682 = vrot.lane.b32.xlu0 %v677, 12
        %v683 = vpop.permute.xlu0 %682
        %684 = vrot.lane.b32.xlu0 %v678, 12
        %v685 = vpop.permute.xlu0 %684
        %686 = vrot.lane.b32.xlu0 %v679, 12
        %v687 = vpop.permute.xlu0 %686
        %v688 = vunpack.c.l.b16 %v627
        %v689 = vpack.c.b16 %v638, %v637
        %v690 = vpack.c.b16 %v640, %v639
        %v691 = vpack.c.b16 %v642, %v641
        %v692 = vpack.c.b16 %v688, %v643
        %693 = vrot.lane.b32.xlu0 %v689, 16
        %v694 = vpop.permute.xlu0 %693
        %695 = vrot.lane.b32.xlu0 %v690, 16
        %v696 = vpop.permute.xlu0 %695
        %697 = vrot.lane.b32.xlu0 %v691, 16
        %v698 = vpop.permute.xlu0 %697
        %699 = vrot.lane.b32.xlu0 %v692, 16
        %v700 = vpop.permute.xlu0 %699
        %v701 = vunpack.c.l.b16 %v631
        %v702 = vpack.c.b16 %v658, %v657
        %v703 = vpack.c.b16 %v660, %v659
        %v704 = vpack.c.b16 %v662, %v661
        %v705 = vpack.c.b16 %v701, %v663
        %706 = vrot.lane.b32.xlu0 %v702, 20
        %v707 = vpop.permute.xlu0 %706
        %708 = vrot.lane.b32.xlu0 %v703, 20
        %v709 = vpop.permute.xlu0 %708
        %710 = vrot.lane.b32.xlu0 %v704, 20
        %v711 = vpop.permute.xlu0 %710
        %712 = vrot.lane.b32.xlu0 %v705, 20
        %v713 = vpop.permute.xlu0 %712
        %v714 = vpack.c.b16 %v427, %v610
        %715 = vrot.lane.b32.xlu0 %v633, 24
        %v716 = vpop.permute.xlu0 %715
        %717 = vrot.lane.b32.xlu0 %v634, 24
        %v718 = vpop.permute.xlu0 %717
        %719 = vrot.lane.b32.xlu0 %v635, 24
        %v720 = vpop.permute.xlu0 %719
        %721 = vrot.lane.b32.xlu0 %v714, 24
        %v722 = vpop.permute.xlu0 %721
        %v723 = vpack.c.b16 %v636, %v688
        %724 = vrot.lane.b32.xlu0 %v645, 28
        %v725 = vpop.permute.xlu0 %724
        %726 = vrot.lane.b32.xlu0 %v646, 28
        %v727 = vpop.permute.xlu0 %726
        %728 = vrot.lane.b32.xlu0 %v647, 28
        %v729 = vpop.permute.xlu0 %728
        %730 = vrot.lane.b32.xlu0 %v723, 28
        %v731 = vpop.permute.xlu0 %730
        %v732 = vpack.c.b16 %v656, %v701
        %733 = vrot.lane.b32.xlu0 %v665, 32
        %v734 = vpop.permute.xlu0 %733
        %735 = vrot.lane.b32.xlu0 %v666, 32
        %v736 = vpop.permute.xlu0 %735
        %737 = vrot.lane.b32.xlu0 %v667, 32
        %v738 = vpop.permute.xlu0 %737
        %739 = vrot.lane.b32.xlu0 %v732, 32
        %v740 = vpop.permute.xlu0 %739
        %vm741 = vcmask 31744
        %v744 = vsel %vm741, %v632, %v649
        %v747 = vsel %vm741, %v633, %v651
        %v750 = vsel %vm741, %v634, %v653
        %v753 = vsel %vm741, %v635, %v655
        %vm754 = vcmask 64512
        %v756 = vsel %vm754, %v744, %v669
        %v758 = vsel %vm754, %v747, %v671
        %v760 = vsel %vm754, %v750, %v673
        %v762 = vsel %vm754, %v753, %v675
        %vm763 = vcmask 97280
        %v765 = vsel %vm763, %v756, %v681
        %v767 = vsel %vm763, %v758, %v683
        %v769 = vsel %vm763, %v760, %v685
        %v771 = vsel %vm763, %v762, %v687
        %vm772 = vcmask 130048
        %v774 = vsel %vm772, %v765, %v694
        %v776 = vsel %vm772, %v767, %v696
        %v778 = vsel %vm772, %v769, %v698
        %v780 = vsel %vm772, %v771, %v700
        %vm781 = vcmask 162816
        %v783 = vsel %vm781, %v774, %v707
        %v785 = vsel %vm781, %v776, %v709
        %v787 = vsel %vm781, %v778, %v711
        %v789 = vsel %vm781, %v780, %v713
        %vm790 = vcmask 195584
        %v792 = vsel %vm790, %v783, %v716
        %v794 = vsel %vm790, %v785, %v718
        %v796 = vsel %vm790, %v787, %v720
        %v798 = vsel %vm790, %v789, %v722
        %vm799 = vcmask 228352
        %v801 = vsel %vm799, %v792, %v725
        %v803 = vsel %vm799, %v794, %v727
        %v805 = vsel %vm799, %v796, %v729
        %v807 = vsel %vm799, %v798, %v731
        %vm808 = vcmask 261120
        %v810 = vsel %vm808, %v801, %v734
        %v812 = vsel %vm808, %v803, %v736
        %v814 = vsel %vm808, %v805, %v738
        %v816 = vsel %vm808, %v807, %v740
        %v817 = vld [vmem:[%s1] sm:$0xf]
        %vm818 = vcmask 293888
        %v820 = vsel %vm818, %v817, 0
        %v822 = vsel %vm818, %v810, 0
        %v824 = vsel %vm818, %v812, 0
        %v826 = vsel %vm818, %v814, 0
        %v828 = vsel %vm818, %v816, 0
        %830 = vmatpush.bf16.xpose.msra.mxu0 0
        %831 = vmatpush.bf16.xpose.msra.mxu0 0
        %832 = vmatpush.bf16.xpose.msra.mxu0 0
        %833 = vmatpush.bf16.xpose.msra.mxu0 0
        %834 = vmatpush.bf16.xpose.msra.mxu0 %v828
        %835 = vmatpush.bf16.xpose.msra.mxu0 %v826
        %836 = vmatpush.bf16.xpose.msra.mxu0 %v824
        %837 = vmatpush.bf16.xpose.msra.mxu0 %v822
        %838 = vmatmul.bf16.gmra.mxu0 %v820
        %v839 = vpop.f32.mrf.mxu0
        %v840 = vadd.f32 0.0, %v839
        %v841 = vpop.f32.mrf.mxu0
        %842 = vdwg.mxu0
        %v843 = vld [vmem:[%s2] sm:$0xff]
        %845 = vset.pattern.permute.xlu0 0
        %846 = vperm.xlu0 %845, %v843
        %v847 = vpop.permute.xlu0 %846
        %v849 = vmul.f32 %v840, %v847
        %v850 = vld [vmem:[%s3] sm:$0xff]
        %852 = vset.pattern.permute.xlu0 0
        %853 = vperm.xlu0 %852, %v850
        %v854 = vpop.permute.xlu0 %853
        %v856 = vadd.f32 %v849, %v854
        %v857 = vmax.f32 %v856, 0.0
        %vm858 = vcmask 523264
        %859 = vst.msk [vmem:[%s217] sm:$0xff] %vm858, %v857
        %s860 = sand.u32 %s118, 1
        %s861 = scalar_lea.sflag [#allocation4], %s860
        %s862 = sand.u32 %s118, 1
        %s863 = smul.addr %s862, 8
        %s864 = scalar_lea.vmem [#allocation5], %s863
        // Predicated region
        $region41: #{tpu_custom_call.1} parent=35 // pred_check
          %p865 = pneg %p128
        $region42: #{tpu_custom_call.1} parent=35 // pred_check_branch
          %867 = sbr.rel (%p865) target = $region44
        $region43: #{tpu_custom_call.1} parent=35 // pred_region
          %869 = vsyncadd %s861, 0
          %s870 = smul.addr %s21, 8
          %s871 = scalar_lea.hbm %s4, %s870
          %s873 = sshll.u32 %s864, 4
          %s874 = int_to_ptr.vmem [resolvable:$true] %s873
          %s875 = sshll.u32 %s871, 4
          %s876 = int_to_ptr.hbm [resolvable:$true] %s875
          %878 = dma.vmem_to_hbm [thread:$0]  %s874, 128, %s876, %s861
        $region44: #{tpu_custom_call.1} parent=35 // pred_fallthru
          _
      $region36: #{tpu_custom_call.1} parent=5 // pred_fallthru
        _
      %p879 = scmp.le.s32.totalorder 2, %s16
      // Predicated region
      $region45: #{tpu_custom_call.1} parent=5 // pred_check
        %p880 = pneg %p879
      $region46: #{tpu_custom_call.1} parent=5 // pred_check_branch
        %882 = sbr.rel (%p880) target = $region48
      $region47: #{tpu_custom_call.1} parent=5 // pred_region
        %s883 = ssub.s32 %s16, 2
        // Predicated region
        $region49: #{tpu_custom_call.1} parent=47 // pred_check
          %p884 = pneg %p134
        $region50: #{tpu_custom_call.1} parent=47 // pred_check_branch
          %886 = sbr.rel (%p884) target = $region52
        $region51: #{tpu_custom_call.1} parent=47 // pred_region
          %s887 = sand.u32 %s119, 1
          %s888 = scalar_lea.sflag [#allocation4], %s887
          %s889 = sand.u32 %s119, 1
          %s890 = smul.addr %s889, 8
          %s891 = scalar_lea.vmem [#allocation5], %s890
          %893 = dma.done %s888, 128
        $region52: #{tpu_custom_call.1} parent=47 // pred_fallthru
          _
      $region48: #{tpu_custom_call.1} parent=5 // pred_fallthru
        _
    $region6: #{tpu_custom_call.1} parent=1 // loop_footer
      %s20 = sadd.s32 1, %s16
    $region7: #{tpu_custom_call.1} parent=1 // loop_footer_branch
      %15 = sbr.rel target = $region3
    $region8: #{tpu_custom_call.1} parent=1 // loop_exit
      _
    %894 = vsyncpa [#allocation3], 1
    %s895 = scalar_lea.sflag [#allocation3], 1
    %896 = vsyncpa %s895, 1
    %897 = vsyncpa [#allocation4], 1
    %s898 = scalar_lea.sflag [#allocation4], 1
    %899 = vsyncpa %s898, 1

</llo_original>
